<compile_context>
chip_gen: v6e
topology: v6e:2x2x1
jax: 0.10.0
libtpu: 0.0.40
codegen_flags: <defaults>
</compile_context>

<pallas_src>
import math
import numpy as np
import jax
import jax.numpy as jnp
from jax import lax
from jax.experimental import pallas as pl
from jax.experimental.pallas import tpu as pltpu

STRIDE = 6
KSIZE = 30
PAD = 12                      # == 2 * STRIDE (phase decomposition relies on this)
NTAPS = KSIZE // STRIDE       # 5 taps contribute to every output position
HALO = NTAPS - 1              # extra input rows needed per L-tile window
EPS = 1e-5
SQRT_HALF = 0.7071067811865476

# MXU operand dtype.  bf16 would give 2-4x MXU rate + halved operand DMA, but adds
# ~5e-3 absolute error vs the float64 reference; f32 keeps the 1e-3/2e-3 check and the
# module's fp32 semantics.  (Flip to jnp.bfloat16 if that tolerance is acceptable.)
MATMUL_DTYPE = jnp.float32


def _round_up(v, m):
    return ((v + m - 1) // m) * m


def _choose_l_tile(L, N, max_tile=512):
    """L-tile (multiple of 8, <= max_tile); ensure >=2 grid steps when shape allows (v7x)."""
    tl = min(max_tile, _round_up(L, 8))
    if N == 1 and L > 8 and -(-L // tl) < 2:
        tl = _round_up(-(-L // 2), 8)
    return tl


def _make_fused_kernel(TL, CW_pad, last_valid, n_l_tiles):
    def kernel(xpad_ref, w_ref, b_ref, z_ref, psum_ref, xbuf, sem):
        n = pl.program_id(0)
        lt = pl.program_id(1)

        # --- in-kernel im2col: halo DMA of this tile's (TL+4, Cin_pad) input window ---
        start = pl.multiple_of(lt * TL, 8)
        cp = pltpu.make_async_copy(
            xpad_ref.at[n, pl.ds(start, TL + HALO), :], xbuf, sem)
        cp.start()
        cp.wait()

        # --- conv-transpose as 5 shifted dot-accumulates (phase-merged weights) ------
        acc = jnp.dot(xbuf[pl.ds(HALO, TL), :], w_ref[0],
                      preferred_element_type=jnp.float32)
        for j in range(1, NTAPS):
            acc = acc + jnp.dot(xbuf[pl.ds(HALO - j, TL), :], w_ref[j],
                                preferred_element_type=jnp.float32)
        acc = acc + b_ref[...]

        # exact (erf) GELU, as nn.GELU() default
        z = 0.5 * acc * (1.0 + lax.erf(acc * SQRT_HALF))
        z_ref[...] = z[None]

        # --- BN partial stats (mask rows that are only L-padding) --------------------
        if last_valid == TL:
            zm = z
        else:
            nvalid = jnp.where(lt == n_l_tiles - 1, last_valid, TL)
            rows = lax.broadcasted_iota(jnp.int32, (TL, CW_pad), 0)
            zm = jnp.where(rows < nvalid, z, 0.0)
        s = jnp.sum(zm, axis=0, keepdims=True)                 # (1, CW_pad)
        ss = jnp.sum(zm * zm, axis=0, keepdims=True)           # (1, CW_pad)
        stats8 = jnp.concatenate(
            [s, ss, jnp.zeros((8 - 2, CW_pad), jnp.float32)], axis=0)  # (8, CW_pad), aligned store
        psum_ref[...] = stats8[None, None]

    return kernel


def conv_transpose_model_forward(x, w, b, gamma, beta):
    """x: (N, Cin, L) NCL f32. w: (Cin, Cout, 30). Returns (N, Cout, 6*L) f32."""
    N, Cin, L = x.shape
    _, Cout, K = w.shape
    assert K == KSIZE

    CW = STRIDE * Cout
    Cin_pad = _round_up(Cin, 128)       # MXU K dim / xbuf lane dim
    CW_pad = _round_up(CW, 128)         # lane-dense output width (phase-major columns)

    TL = _choose_l_tile(L, N)
    n_l_tiles = -(-L // TL)
    Lpad = n_l_tiles * TL
    last_valid = L - (n_l_tiles - 1) * TL

    # ---- wrapper prep (input read once): channels-last + conv/row/channel zero pad ---
    xl = jnp.transpose(x, (0, 2, 1)).astype(MATMUL_DTYPE)          # (N, L, Cin)
    xpad = jnp.pad(xl, ((0, 0), (2, Lpad - L + 2), (0, Cin_pad - Cin)))  # (N, Lpad+4, Cin_pad)

    # per-tap phase-merged weights: wt[j, ci, r*Cout+co] = w[ci, co, 6*j + r]
    wk = jnp.transpose(w, (2, 0, 1)).reshape(NTAPS, STRIDE, Cin, Cout)
    wt = jnp.transpose(wk, (0, 2, 1, 3)).reshape(NTAPS, Cin, CW)
    wt = jnp.pad(wt, ((0, 0), (0, Cin_pad - Cin), (0, CW_pad - CW))).astype(MATMUL_DTYPE)
    ball = jnp.pad(jnp.broadcast_to(b, (STRIDE, Cout)).reshape(1, CW),
                   ((0, 0), (0, CW_pad - CW))).astype(jnp.float32)   # pad cols -> GELU(0)=0

    kernel = _make_fused_kernel(TL, CW_pad, last_valid, n_l_tiles)

    cparams = pltpu.CompilerParams(
        dimension_semantics=("parallel", "parallel"),
        vmem_limit_bytes=48 * 1024 * 1024,   # fits v7x's 64 MiB physical VMEM with headroom
    )

    z3d, psums = pl.pallas_call(
        kernel,
        grid=(N, n_l_tiles),
        in_specs=[
            pl.BlockSpec(memory_space=pl.ANY),                                 # xpad: manual halo DMA
            pl.BlockSpec((NTAPS, Cin_pad, CW_pad), lambda n, lt: (0, 0, 0)),   # weights (grid-invariant)
            pl.BlockSpec((1, CW_pad), lambda n, lt: (0, 0)),                   # bias (grid-invariant)
        ],
        out_specs=(
            pl.BlockSpec((1, TL, CW_pad), lambda n, lt: (n, lt, 0)),           # pre-BN activations
            pl.BlockSpec((1, 1, 8, CW_pad), lambda n, lt: (n, lt, 0, 0)),      # BN partial stats
        ),
        out_shape=(
            jax.ShapeDtypeStruct((N, Lpad, CW_pad), jnp.float32),
            jax.ShapeDtypeStruct((N, n_l_tiles, 8, CW_pad), jnp.float32),
        ),
        scratch_shapes=[
            pltpu.VMEM((TL + HALO, Cin_pad), MATMUL_DTYPE),
            pltpu.SemaphoreType.DMA(()),
        ],
        compiler_params=cparams,
        cost_estimate=pl.CostEstimate(
            flops=2 * N * Lpad * NTAPS * Cin_pad * CW_pad + 4 * N * Lpad * CW_pad,
            transcendentals=N * Lpad * CW_pad,
            bytes_accessed=4 * (N * (Lpad + HALO) * Cin_pad
                                + NTAPS * Cin_pad * CW_pad + CW_pad
                                + N * Lpad * CW_pad + N * n_l_tiles * 8 * CW_pad),
        ),
    )(xpad, wt, ball)

    # ---- O(Cout) batch-stat reduction -> BN affine scale/shift (tiny, plain JAX) -----
    # Note: E[z^2]-E[z]^2 in f32 can cancel for huge N*L; per-tile partials limit the
    # in-kernel accumulation length, acceptable here.
    tile_sums = psums[:, :, 0, :CW]
    tile_sqs = psums[:, :, 1, :CW]
    ch_sum = jnp.sum(tile_sums, axis=(0, 1)).reshape(STRIDE, Cout).sum(axis=0)
    ch_sumsq = jnp.sum(tile_sqs, axis=(0, 1)).reshape(STRIDE, Cout).sum(axis=0)
    cnt = float(N * L * STRIDE)
    mean = ch_sum / cnt
    var = jnp.maximum(ch_sumsq / cnt - mean * mean, 0.0)        # biased variance (train mode)
    inv = lax.rsqrt(var + EPS)
    scale = gamma * inv
    shift = beta - mean * scale
    # TODO(synk): BatchNorm running_mean / running_var buffer updates (training-mode
    # side effect, not part of the returned tensor) are not emulated.

    # ---- BN affine fused by XLA into the single final relayout to (N, Cout, 6*L) -----
    z = z3d[:, :L, :CW].reshape(N, L, STRIDE, Cout)
    y = z * scale + shift
    y = jnp.transpose(y, (0, 3, 1, 2)).reshape(N, Cout, STRIDE * L)
    return y


def _ref_forward(x, w, b, gamma, beta):
    """Plain numpy reference of the PyTorch module's forward (training-mode BN)."""
    x = np.asarray(x, np.float64)
    w = np.asarray(w, np.float64)
    b = np.asarray(b, np.float64)
    gamma = np.asarray(gamma, np.float64)
    beta = np.asarray(beta, np.float64)
    N, Cin, L = x.shape
    _, Cout, K = w.shape
    Lout = (L - 1) * STRIDE - 2 * PAD + K
    y = np.zeros((N, Cout, Lout), np.float64)
    for n in range(N):
        for l in range(L):
            for k in range(K):
                t = l * STRIDE - PAD + k
                if 0 <= t < Lout:
                    y[n, :, t] += x[n, :, l] @ w[:, :, k]
    y += b[None, :, None]
    erf = np.vectorize(math.erf)
    y = 0.5 * y * (1.0 + erf(y * SQRT_HALF))
    mean = y.mean(axis=(0, 2), keepdims=True)
    var = y.var(axis=(0, 2), keepdims=True)        # biased, as used for normalization
    return (y - mean) / np.sqrt(var + EPS) * gamma[None, :, None] + beta[None, :, None]


if __name__ == "__main__":
    key = jax.random.PRNGKey(0)
    N, C, L = 2, 32, 16          # small shapes; module: ConvTransposeModel(out_channels=C)
    k1, k2, k3, k4, k5 = jax.random.split(key, 5)
    x = jax.random.normal(k1, (N, C, L), jnp.float32)
    bound = 1.0 / math.sqrt(C * KSIZE)
    w = jax.random.uniform(k2, (C, C, KSIZE), jnp.float32, -bound, bound)
    b = jax.random.uniform(k3, (C,), jnp.float32, -bound, bound)
    gamma = 1.0 + 0.1 * jax.random.normal(k4, (C,), jnp.float32)
    beta = 0.1 * jax.random.normal(k5, (C,), jnp.float32)

    out = jax.jit(conv_transpose_model_forward)(x, w, b, gamma, beta)
    out = jax.block_until_ready(out)

    ref = _ref_forward(x, w, b, gamma, beta)
    np.testing.assert_allclose(np.asarray(out), ref, rtol=1e-3, atol=2e-3)
    print("KERNEL_OK")
</pallas_src>

<mosaic_0001>
module attributes {stable_mosaic.version = 11 : i64} {
  func.func @kernel(%arg0: i32, %arg1: i32, %arg2: memref<2x20x128xf32, #tpu.memory_space<any>>, %arg3: memref<5x128x256xf32, #tpu.memory_space<vmem>>, %arg4: memref<1x256xf32, #tpu.memory_space<vmem>>, %arg5: memref<1x16x256xf32, #tpu.memory_space<vmem>>, %arg6: memref<1x1x8x256xf32, #tpu.memory_space<vmem>>, %arg7: memref<20x128xf32, #tpu.memory_space<vmem>>, %arg8: memref<!tpu.dma_semaphore, #tpu.memory_space<semaphore_mem>>) attributes {dimension_semantics = [#tpu.dimension_semantics<parallel>, #tpu.dimension_semantics<parallel>], iteration_bounds = array<i64: 2, 1>, scalar_prefetch = 0 : i64, scratch_operands = 2 : i64, tpu.core_type = #tpu.core_type<tc>, window_params = [{}, {pipeline_mode = #tpu.pipeline_mode<synchronous>, transform_indices = @transform_1, window_bounds = array<i64: 5, 128, 256>}, {pipeline_mode = #tpu.pipeline_mode<synchronous>, transform_indices = @transform_2, window_bounds = array<i64: 1, 256>}, {transform_indices = @transform_3, window_bounds = array<i64: 1, 16, 256>}, {transform_indices = @transform_4, window_bounds = array<i64: 1, 1, 8, 256>}]} {
    %c16_i32 = arith.constant 16 : i32
    %0 = arith.muli %arg1, %c16_i32 : i32
    %1 = tpu.assume_multiple %0, 8 : i32
    %c0_i32 = arith.constant 0 : i32
    %2 = tpu.memref_slice %arg2[%arg0, %1, %c0_i32] : memref<2x20x128xf32, #tpu.memory_space<any>> -> memref<1x20x128xf32, #tpu.memory_space<any>>
    %3 = tpu.memref_squeeze %2 : memref<1x20x128xf32, #tpu.memory_space<any>> -> memref<20x128xf32, #tpu.memory_space<any>>
    tpu.enqueue_dma source(%3 : memref<20x128xf32, #tpu.memory_space<any>>) target(%arg7 : memref<20x128xf32, #tpu.memory_space<vmem>>) target_semaphore(%arg8 : memref<!tpu.dma_semaphore, #tpu.memory_space<semaphore_mem>>)
    %c0_i32_0 = arith.constant 0 : i32
    %4 = tpu.memref_slice %arg2[%arg0, %1, %c0_i32_0] : memref<2x20x128xf32, #tpu.memory_space<any>> -> memref<1x20x128xf32, #tpu.memory_space<any>>
    %5 = tpu.memref_squeeze %4 : memref<1x20x128xf32, #tpu.memory_space<any>> -> memref<20x128xf32, #tpu.memory_space<any>>
    tpu.wait_dma2 semaphore(%arg8 : memref<!tpu.dma_semaphore, #tpu.memory_space<semaphore_mem>>) src(%5 : memref<20x128xf32, #tpu.memory_space<any>>) dst(%arg7 : memref<20x128xf32, #tpu.memory_space<vmem>>)
    %c4 = arith.constant 4 : index
    %c0 = arith.constant 0 : index
    %6 = vector.load %arg7[%c4, %c0] : memref<20x128xf32, #tpu.memory_space<vmem>>, vector<16x128xf32>
    %c0_1 = arith.constant 0 : index
    %c0_2 = arith.constant 0 : index
    %c0_3 = arith.constant 0 : index
    %7 = vector.load %arg3[%c0_1, %c0_2, %c0_3] : memref<5x128x256xf32, #tpu.memory_space<vmem>>, vector<1x128x256xf32>
    %8 = vector.shape_cast %7 : vector<1x128x256xf32> to vector<128x256xf32>
    %cst = arith.constant dense<0.000000e+00> : vector<16x256xf32>
    %9 = tpu.matmul %6, %8, %cst {dimension_numbers = #tpu.dot_dimension_numbers<[1], [0], [0], [1], [0, 0, 1, 1], [], []>} : vector<16x128xf32>, vector<128x256xf32>, vector<16x256xf32> -> vector<16x256xf32>
    %c3 = arith.constant 3 : index
    %c0_4 = arith.constant 0 : index
    %10 = vector.load %arg7[%c3, %c0_4] : memref<20x128xf32, #tpu.memory_space<vmem>>, vector<16x128xf32>
    %c1 = arith.constant 1 : index
    %c0_5 = arith.constant 0 : index
    %c0_6 = arith.constant 0 : index
    %11 = vector.load %arg3[%c1, %c0_5, %c0_6] : memref<5x128x256xf32, #tpu.memory_space<vmem>>, vector<1x128x256xf32>
    %12 = vector.shape_cast %11 : vector<1x128x256xf32> to vector<128x256xf32>
    %cst_7 = arith.constant dense<0.000000e+00> : vector<16x256xf32>
    %13 = tpu.matmul %10, %12, %cst_7 {dimension_numbers = #tpu.dot_dimension_numbers<[1], [0], [0], [1], [0, 0, 1, 1], [], []>} : vector<16x128xf32>, vector<128x256xf32>, vector<16x256xf32> -> vector<16x256xf32>
    %14 = arith.addf %9, %13 : vector<16x256xf32>
    %c2 = arith.constant 2 : index
    %c0_8 = arith.constant 0 : index
    %15 = vector.load %arg7[%c2, %c0_8] : memref<20x128xf32, #tpu.memory_space<vmem>>, vector<16x128xf32>
    %c2_9 = arith.constant 2 : index
    %c0_10 = arith.constant 0 : index
    %c0_11 = arith.constant 0 : index
    %16 = vector.load %arg3[%c2_9, %c0_10, %c0_11] : memref<5x128x256xf32, #tpu.memory_space<vmem>>, vector<1x128x256xf32>
    %17 = vector.shape_cast %16 : vector<1x128x256xf32> to vector<128x256xf32>
    %cst_12 = arith.constant dense<0.000000e+00> : vector<16x256xf32>
    %18 = tpu.matmul %15, %17, %cst_12 {dimension_numbers = #tpu.dot_dimension_numbers<[1], [0], [0], [1], [0, 0, 1, 1], [], []>} : vector<16x128xf32>, vector<128x256xf32>, vector<16x256xf32> -> vector<16x256xf32>
    %19 = arith.addf %14, %18 : vector<16x256xf32>
    %c1_13 = arith.constant 1 : index
    %c0_14 = arith.constant 0 : index
    %20 = vector.load %arg7[%c1_13, %c0_14] : memref<20x128xf32, #tpu.memory_space<vmem>>, vector<16x128xf32>
    %c3_15 = arith.constant 3 : index
    %c0_16 = arith.constant 0 : index
    %c0_17 = arith.constant 0 : index
    %21 = vector.load %arg3[%c3_15, %c0_16, %c0_17] : memref<5x128x256xf32, #tpu.memory_space<vmem>>, vector<1x128x256xf32>
    %22 = vector.shape_cast %21 : vector<1x128x256xf32> to vector<128x256xf32>
    %cst_18 = arith.constant dense<0.000000e+00> : vector<16x256xf32>
    %23 = tpu.matmul %20, %22, %cst_18 {dimension_numbers = #tpu.dot_dimension_numbers<[1], [0], [0], [1], [0, 0, 1, 1], [], []>} : vector<16x128xf32>, vector<128x256xf32>, vector<16x256xf32> -> vector<16x256xf32>
    %24 = arith.addf %19, %23 : vector<16x256xf32>
    %c0_19 = arith.constant 0 : index
    %c0_20 = arith.constant 0 : index
    %25 = vector.load %arg7[%c0_19, %c0_20] : memref<20x128xf32, #tpu.memory_space<vmem>>, vector<16x128xf32>
    %c4_21 = arith.constant 4 : index
    %c0_22 = arith.constant 0 : index
    %c0_23 = arith.constant 0 : index
    %26 = vector.load %arg3[%c4_21, %c0_22, %c0_23] : memref<5x128x256xf32, #tpu.memory_space<vmem>>, vector<1x128x256xf32>
    %27 = vector.shape_cast %26 : vector<1x128x256xf32> to vector<128x256xf32>
    %cst_24 = arith.constant dense<0.000000e+00> : vector<16x256xf32>
    %28 = tpu.matmul %25, %27, %cst_24 {dimension_numbers = #tpu.dot_dimension_numbers<[1], [0], [0], [1], [0, 0, 1, 1], [], []>} : vector<16x128xf32>, vector<128x256xf32>, vector<16x256xf32> -> vector<16x256xf32>
    %29 = arith.addf %24, %28 : vector<16x256xf32>
    %c0_25 = arith.constant 0 : index
    %c0_26 = arith.constant 0 : index
    %30 = vector.load %arg4[%c0_25, %c0_26] : memref<1x256xf32, #tpu.memory_space<vmem>>, vector<1x256xf32>
    %31 = vector.broadcast %30 : vector<1x256xf32> to vector<16x256xf32>
    %32 = arith.addf %29, %31 : vector<16x256xf32>
    %cst_27 = arith.constant 5.000000e-01 : f32
    %33 = vector.broadcast %cst_27 : f32 to vector<16x256xf32>
    %34 = arith.mulf %33, %32 : vector<16x256xf32>
    %cst_28 = arith.constant 0.707106769 : f32
    %35 = vector.broadcast %cst_28 : f32 to vector<16x256xf32>
    %36 = arith.mulf %32, %35 : vector<16x256xf32>
    %37 = math.erf %36 : vector<16x256xf32>
    %cst_29 = arith.constant 1.000000e+00 : f32
    %38 = vector.broadcast %cst_29 : f32 to vector<16x256xf32>
    %39 = arith.addf %38, %37 : vector<16x256xf32>
    %40 = arith.mulf %34, %39 : vector<16x256xf32>
    %41 = vector.shape_cast %40 : vector<16x256xf32> to vector<1x16x256xf32>
    %c0_30 = arith.constant 0 : index
    %c0_31 = arith.constant 0 : index
    %c0_32 = arith.constant 0 : index
    %42 = vector.load %arg5[%c0_30, %c0_31, %c0_32] : memref<1x16x256xf32, #tpu.memory_space<vmem>>, vector<1x16x256xf32>
    tpu.vector_store %arg5[%c0_30, %c0_31, %c0_32], %41 {strides = array<i32>} : memref<1x16x256xf32, #tpu.memory_space<vmem>>, vector<1x16x256xf32>,
    %cst_33 = arith.constant dense<0.000000e+00> : vector<256xf32>
    %43 = vector.multi_reduction <add>, %40, %cst_33 [0] : vector<16x256xf32> to vector<256xf32>
    %44 = vector.shape_cast %43 : vector<256xf32> to vector<1x256xf32>
    %45 = arith.mulf %40, %40 : vector<16x256xf32>
    %cst_34 = arith.constant dense<0.000000e+00> : vector<256xf32>
    %46 = vector.multi_reduction <add>, %45, %cst_34 [0] : vector<16x256xf32> to vector<256xf32>
    %47 = vector.shape_cast %46 : vector<256xf32> to vector<1x256xf32>
    %cst_35 = arith.constant 0.000000e+00 : f32
    %48 = vector.broadcast %cst_35 : f32 to vector<6x256xf32>
    %49 = tpu.concatenate %44, %47, %48 in 0 : vector<1x256xf32>, vector<1x256xf32>, vector<6x256xf32> -> vector<8x256xf32>
    %50 = vector.shape_cast %49 : vector<8x256xf32> to vector<1x1x8x256xf32>
    %c0_36 = arith.constant 0 : index
    %c0_37 = arith.constant 0 : index
    %c0_38 = arith.constant 0 : index
    %c0_39 = arith.constant 0 : index
    %51 = vector.load %arg6[%c0_36, %c0_37, %c0_38, %c0_39] : memref<1x1x8x256xf32, #tpu.memory_space<vmem>>, vector<1x1x8x256xf32>
    tpu.vector_store %arg6[%c0_36, %c0_37, %c0_38, %c0_39], %50 {strides = array<i32>} : memref<1x1x8x256xf32, #tpu.memory_space<vmem>>, vector<1x1x8x256xf32>,
    return
  }
  func.func @transform_1(%arg0: i32, %arg1: i32) -> (i32, i32, i32) {
    %c0_i32 = arith.constant 0 : i32
    %c0_i32_0 = arith.constant 0 : i32
    %c0_i32_1 = arith.constant 0 : i32
    %c0_i32_2 = arith.constant 0 : i32
    return %c0_i32, %c0_i32_0, %c0_i32_1 : i32, i32, i32
  }
  func.func @transform_2(%arg0: i32, %arg1: i32) -> (i32, i32) {
    %c0_i32 = arith.constant 0 : i32
    %c0_i32_0 = arith.constant 0 : i32
    %c0_i32_1 = arith.constant 0 : i32
    return %c0_i32, %c0_i32_0 : i32, i32
  }
  func.func @transform_3(%arg0: i32, %arg1: i32) -> (i32, i32, i32) {
    %c0_i32 = arith.constant 0 : i32
    %c0_i32_0 = arith.constant 0 : i32
    return %arg0, %arg1, %c0_i32 : i32, i32, i32
  }
  func.func @transform_4(%arg0: i32, %arg1: i32) -> (i32, i32, i32, i32) {
    %c0_i32 = arith.constant 0 : i32
    %c0_i32_0 = arith.constant 0 : i32
    %c0_i32_1 = arith.constant 0 : i32
    return %arg0, %arg1, %c0_i32, %c0_i32_0 : i32, i32, i32, i32
  }
}

</mosaic_0001>

<llo_original>
// kernel: conv_transpose_model_forward.1
$region0: #{conv_transpose_model_forward.1}
  #allocation0 [shape = 'u32[]', space=smem, size = 0x4, offset = 0x4, fixed_abs, tag = 'smem constant byte address 0x4 - core index']
  #allocation1 [shape = 'u32[144,128]{1,0:T(1,128)}', space=vmem, size = 0x12000, scoped, tag = 'internal scratch']
  #allocation2 [shape = 'f32[20,128]{1,0:T(8,128)}', space=vmem, size = 0x3000, scoped, tag = 'scratch operand']
  #allocation3 [shape = 's32[1]{0}', space=sflag, size = 0x4, scoped, tag = 'scratch operand']
  #allocation4 [shape = 's32[]', space=sflag, size = 0x4, offset = 0, fixed_abs, tag = 'sflag constant byte address 0x0 - dummy sync flag']
  %s0 = inlined_call_operand.vmem [shape: f32[2,20,128], index: 0, kind: input, shape index: {}]
  %s1 = inlined_call_operand.vmem [shape: f32[5,128,256], index: 1, kind: input, shape index: {}]
  %s2 = inlined_call_operand.vmem [shape: f32[1,256], index: 2, kind: input, shape index: {}]
  %s3 = inlined_call_operand.vmem [shape: f32[2,16,256], index: 3, kind: output, shape index: {0}]
  %s4 = inlined_call_operand.vmem [shape: f32[2,1,8,256], index: 4, kind: output, shape index: {1}]
  %5 = xla_tuple %s3, %s4
  %s6 = sld [smem:[#allocation0]]
  $region86: #{conv_transpose_model_forward.1} parent=0
    _
  %s8 = ssub.s32 1, %s6
  %s9 = scalar_select 0, %s8, %s6
  loop: start=0, step=1, limit=4
  $region2: #{conv_transpose_model_forward.1} parent=0 // loop_pre_header
    _
  $region3: #{conv_transpose_model_forward.1} parent=0 // loop_header
    %s11 = sphi 0, %s15
    %p12 = scmp.ge.s32.totalorder %s11, 4
    %s18 = sphi 0, %s30
    %s19 = sphi 0, %s26
    %s20 = sphi 0, %s18
    %s21 = sphi 0, %s19
    %s22 = sphi 0, %s20
    %s23 = sphi 0, %s21
    %s31 = sphi 0, %s31
    %s33 = sphi 0, %s31
    %s34 = sphi 0, %s33
    %s48 = sphi 0, %s34
    %s52 = sphi 0, %s52
    %s54 = sphi 0, %s52
    %s55 = sphi 0, %s54
    %s69 = sphi 0, %s55
    %s77 = sphi 0, %s79
    %s80 = sphi 0, %s77
    %s81 = sphi 0, %s80
    %s97 = sphi 0, %s81
    %s105 = sphi 0, %s107
    %s108 = sphi 0, %s105
    %s109 = sphi 0, %s108
    %s125 = sphi 0, %s109
  $region4: #{conv_transpose_model_forward.1} parent=0 // loop_header_branch
    %14 = sbr.rel (%p12) target = $region8
  $region5: #{conv_transpose_model_forward.1} parent=0 // loop_body
    %s16 = ssub.s32 %s11, 1
    %s17 = ssub.s32 %s11, 2
    %s24 = sadd.s32 1, %s19
    %p25 = scmp.ge.s32.totalorder %s24, 1
    %s26 = scalar_select %p25, 0, %s24
    %s27 = sadd.s32 1, %s18
    %s28 = scalar_select %p25, %s27, %s18
    %p29 = scmp.ge.s32.totalorder %s28, 2
    %s30 = scalar_select %p29, 0, %s28
    %s32 = sadd.s32 %s31, 1
    %p35 = scmp.eq.s32.totalorder %s11, 1
    %p36 = scmp.ne.s32.totalorder %s31, %s33
    %p37 = scmp.eq.s32.totalorder %s11, 0
    %p38 = por %p36, %p37
    %p39 = scmp.ne.s32.totalorder %s31, %s33
    %p40 = scmp.eq.s32.totalorder %s16, 1
    %p41 = por %p39, %p40
    %p42 = scmp.ne.s32.totalorder %s33, %s34
    %p43 = scmp.eq.s32.totalorder %s16, 0
    %p44 = por %p42, %p43
    %p45 = scmp.ne.s32.totalorder %s33, %s34
    %p46 = scmp.eq.s32.totalorder %s17, 1
    %p47 = por %p45, %p46
    %p49 = scmp.ne.s32.totalorder %s34, %s48
    %p50 = scmp.eq.s32.totalorder %s17, 0
    %p51 = por %p49, %p50
    %s53 = sadd.s32 %s52, 1
    %p56 = scmp.eq.s32.totalorder %s11, 1
    %p57 = scmp.ne.s32.totalorder %s52, %s54
    %p58 = scmp.eq.s32.totalorder %s11, 0
    %p59 = por %p57, %p58
    %p60 = scmp.ne.s32.totalorder %s52, %s54
    %p61 = scmp.eq.s32.totalorder %s16, 1
    %p62 = por %p60, %p61
    %p63 = scmp.ne.s32.totalorder %s54, %s55
    %p64 = scmp.eq.s32.totalorder %s16, 0
    %p65 = por %p63, %p64
    %p66 = scmp.ne.s32.totalorder %s54, %s55
    %p67 = scmp.eq.s32.totalorder %s17, 1
    %p68 = por %p66, %p67
    %p70 = scmp.ne.s32.totalorder %s55, %s69
    %p71 = scmp.eq.s32.totalorder %s17, 0
    %p72 = por %p70, %p71
    %s73 = ssub.s32 %s18, %s30
    %s74 = ssub.s32 %s19, %s26
    %s75 = sor.u32 %s73, %s74
    %p76 = scmp.eq.s32.totalorder %s75, 0
    %s78 = sadd.s32 %s77, 1
    %s79 = scalar_select %p76, %s77, %s78
    %p82 = pneg %p76
    %p83 = scmp.eq.s32.totalorder %s11, 1
    %p84 = por %p82, %p83
    %p85 = scmp.ne.s32.totalorder %s77, %s80
    %p86 = scmp.eq.s32.totalorder %s11, 0
    %p87 = por %p85, %p86
    %p88 = scmp.ne.s32.totalorder %s77, %s80
    %p89 = scmp.eq.s32.totalorder %s16, 1
    %p90 = por %p88, %p89
    %p91 = scmp.ne.s32.totalorder %s80, %s81
    %p92 = scmp.eq.s32.totalorder %s16, 0
    %p93 = por %p91, %p92
    %p94 = scmp.ne.s32.totalorder %s80, %s81
    %p95 = scmp.eq.s32.totalorder %s17, 1
    %p96 = por %p94, %p95
    %p98 = scmp.ne.s32.totalorder %s81, %s97
    %p99 = scmp.eq.s32.totalorder %s17, 0
    %p100 = por %p98, %p99
    %s101 = ssub.s32 %s18, %s30
    %s102 = ssub.s32 %s19, %s26
    %s103 = sor.u32 %s101, %s102
    %p104 = scmp.eq.s32.totalorder %s103, 0
    %s106 = sadd.s32 %s105, 1
    %s107 = scalar_select %p104, %s105, %s106
    %p110 = pneg %p104
    %p111 = scmp.eq.s32.totalorder %s11, 1
    %p112 = por %p110, %p111
    %p113 = scmp.ne.s32.totalorder %s105, %s108
    %p114 = scmp.eq.s32.totalorder %s11, 0
    %p115 = por %p113, %p114
    %p116 = scmp.ne.s32.totalorder %s105, %s108
    %p117 = scmp.eq.s32.totalorder %s16, 1
    %p118 = por %p116, %p117
    %p119 = scmp.ne.s32.totalorder %s108, %s109
    %p120 = scmp.eq.s32.totalorder %s16, 0
    %p121 = por %p119, %p120
    %p122 = scmp.ne.s32.totalorder %s108, %s109
    %p123 = scmp.eq.s32.totalorder %s17, 1
    %p124 = por %p122, %p123
    %p126 = scmp.ne.s32.totalorder %s109, %s125
    %p127 = scmp.eq.s32.totalorder %s17, 0
    %p128 = por %p126, %p127
    %p129 = scmp.le.s32.totalorder 1, %s11
    %p130 = scmp.lt.s32.totalorder %s11, 3
    %p131 = pnand %p129, %p130
    %p132 = pneg %p131
    // Predicated region
    $region9: #{conv_transpose_model_forward.1} parent=5 // pred_check
      _
    $region10: #{conv_transpose_model_forward.1} parent=5 // pred_check_branch
      %134 = sbr.rel (%p131) target = $region12
    $region11: #{conv_transpose_model_forward.1} parent=5 // pred_region
      %s135 = ssub.s32 %s11, 1
      // Predicated region
      $region13: #{conv_transpose_model_forward.1} parent=11 // pred_check
        %p136 = pneg %p44
      $region14: #{conv_transpose_model_forward.1} parent=11 // pred_check_branch
        %138 = sbr.rel (%p136) target = $region16
      $region15: #{conv_transpose_model_forward.1} parent=11 // pred_region
        _
      $region16: #{conv_transpose_model_forward.1} parent=11 // pred_fallthru
        _
      // Predicated region
      $region17: #{conv_transpose_model_forward.1} parent=11 // pred_check
        %p139 = pneg %p65
      $region18: #{conv_transpose_model_forward.1} parent=11 // pred_check_branch
        %141 = sbr.rel (%p139) target = $region20
      $region19: #{conv_transpose_model_forward.1} parent=11 // pred_region
        _
      $region20: #{conv_transpose_model_forward.1} parent=11 // pred_fallthru
        _
    $region12: #{conv_transpose_model_forward.1} parent=5 // pred_fallthru
      _
    %p142 = scmp.lt.s32.totalorder %s11, 2
    // Predicated region
    $region21: #{conv_transpose_model_forward.1} parent=5 // pred_check
      %p143 = pneg %p142
    $region22: #{conv_transpose_model_forward.1} parent=5 // pred_check_branch
      %145 = sbr.rel (%p143) target = $region24
    $region23: #{conv_transpose_model_forward.1} parent=5 // pred_region
      _
    $region24: #{conv_transpose_model_forward.1} parent=5 // pred_fallthru
      _
    %p146 = scmp.le.s32.totalorder 1, %s11
    %p147 = scmp.lt.s32.totalorder %s11, 3
    %p148 = pnand %p146, %p147
    %p149 = pneg %p148
    // Predicated region
    $region25: #{conv_transpose_model_forward.1} parent=5 // pred_check
      _
    $region26: #{conv_transpose_model_forward.1} parent=5 // pred_check_branch
      %151 = sbr.rel (%p148) target = $region28
    $region27: #{conv_transpose_model_forward.1} parent=5 // pred_region
      %s152 = ssub.s32 %s11, 1
      %p153 = pneg %p44
      %p154 = pneg %p41
      %p155 = pneg %p65
      %p156 = pneg %p62
      %p157 = pneg %p93
      %p158 = pneg %p90
      %s159 = smul.u32 2, %s21
      %p160 = scmp.lt.s32.totalorder %s20, 1
      %s161 = scalar_select %p160, %s20, 1
      %p162 = scmp.lt.s32.totalorder %s159, 1
      %s163 = scalar_select %p162, %s159, 1
      %s164 = smul.addr %s163, 2
      %s165 = smul.addr %s161, 4
      %s166 = sadd.s32 %s164, %s165
      %s167 = smul.addr %s166, 8
      %s168 = scalar_lea.vmem %s3, %s167
      %p169 = pneg %p121
      %p170 = pneg %p118
      %p171 = scmp.lt.s32.totalorder %s20, 1
      %s172 = scalar_select %p171, %s20, 1
      %p173 = scmp.lt.s32.totalorder %s21, 0
      %s174 = scalar_select %p173, %s21, 0
      %s175 = smul.addr %s174, 2
      %s176 = smul.addr %s172, 2
      %s177 = sadd.s32 %s175, %s176
      %s178 = smul.addr %s177, 8
      %s179 = scalar_lea.vmem %s4, %s178
      %s180 = smul.u32 2, %s21
      %p181 = scmp.lt.s32.totalorder %s20, 1
      %s182 = scalar_select %p181, %s20, 1
      %p183 = scmp.lt.s32.totalorder %s180, 1
      %s184 = scalar_select %p183, %s180, 1
      %s185 = smul.addr %s184, 2
      %s186 = smul.addr %s182, 4
      %s187 = sadd.s32 %s185, %s186
      %s188 = smul.addr %s187, 8
      %s189 = scalar_lea.vmem %s3, %s188
      %s190 = smul.u32 2, %s21
      %p191 = scmp.lt.s32.totalorder %s20, 1
      %s192 = scalar_select %p191, %s20, 1
      %p193 = scmp.lt.s32.totalorder %s21, 0
      %s194 = scalar_select %p193, %s21, 0
      %s195 = smul.addr %s194, 2
      %s196 = smul.addr %s192, 2
      %s197 = sadd.s32 %s195, %s196
      %s198 = smul.addr %s197, 8
      %s199 = scalar_lea.vmem %s4, %s198
      %s200 = smul.u32 %s21, 16
      %s201 = smul.u32 %s20, 24
      %s202 = sadd.s32 %s200, %s201
      %s203 = scalar_lea.vmem %s0, %s202
      %p205 = scmp.lt.u32.totalorder 20, 8
      %p206 = pneg %p205
      // Predicated region
      $region29: #{conv_transpose_model_forward.1} parent=27 // pred_check
        _
      $region30: #{conv_transpose_model_forward.1} parent=27 // pred_check_branch
        %208 = sbr.rel (%p205) target = $region32
      $region31: #{conv_transpose_model_forward.1} parent=27 // pred_region
        %s224 = sand.u32 20, 7
        %p225 = scmp.eq.s32.totalorder %s224, 0
        %p226 = pneg %p225
        // Predicated region
        $region44: #{conv_transpose_model_forward.1} parent=31 // pred_check
          _
        $region45: #{conv_transpose_model_forward.1} parent=31 // pred_check_branch
          %228 = sbr.rel (%p225) target = $region47
        $region46: #{conv_transpose_model_forward.1} parent=31 // pred_region
          %s229 = sand.u32 20, 7
          %s230 = ssub.s32 20, %s229
          %s231 = scalar_lea.vmem %s203, %s230
          %s232 = ssub.s32 20, %s229
          %s233 = scalar_lea.vmem [#allocation2], %s232
          loop: start=0, step=1, limit=1
          $region48: #{conv_transpose_model_forward.1} parent=46 // loop_pre_header
            _
          $region49: #{conv_transpose_model_forward.1} parent=46 // loop_header
            %s235 = sphi 0, %s239
            %p236 = scmp.ge.s32.totalorder %s235, 1
            %s240 = sphi %s203, %s203
            %s241 = sphi [#allocation2], [#allocation2]
          $region50: #{conv_transpose_model_forward.1} parent=46 // loop_header_branch
            %238 = sbr.rel (%p236) target = $region54
          $region51: #{conv_transpose_model_forward.1} parent=46 // loop_body
            %v242 = vld [vmem:[%s240] sm:$0xff]
            %243 = vst [vmem:[%s241] sm:$0xff] %v242
            %v244 = vld [vmem:[%s240 + $0x8] sm:$0xff]
            %245 = vst [vmem:[%s241 + $0x8] sm:$0xff] %v244
          $region52: #{conv_transpose_model_forward.1} parent=46 // loop_footer
            %s239 = sadd.s32 1, %s235
          $region53: #{conv_transpose_model_forward.1} parent=46 // loop_footer_branch
            %234 = sbr.rel target = $region49
          $region54: #{conv_transpose_model_forward.1} parent=46 // loop_exit
            _
          %s246 = sshll.u32 1, %s229
          %s247 = ssub.s32 %s246, 1
          loop: start=0, step=1, limit=1
          $region55: #{conv_transpose_model_forward.1} parent=46 // loop_pre_header
            _
          $region56: #{conv_transpose_model_forward.1} parent=46 // loop_header
            %s249 = sphi 0, %s253
            %p250 = scmp.ge.s32.totalorder %s249, 1
            %s254 = sphi %s231, %s231
            %s255 = sphi %s233, %s233
          $region57: #{conv_transpose_model_forward.1} parent=46 // loop_header_branch
            %252 = sbr.rel (%p250) target = $region61
          $region58: #{conv_transpose_model_forward.1} parent=46 // loop_body
            %v256 = vld [vmem:[%s254] sm:%s247]
            %257 = vst [vmem:[%s255] sm:%s247] %v256
          $region59: #{conv_transpose_model_forward.1} parent=46 // loop_footer
            %s253 = sadd.s32 1, %s249
          $region60: #{conv_transpose_model_forward.1} parent=46 // loop_footer_branch
            %248 = sbr.rel target = $region56
          $region61: #{conv_transpose_model_forward.1} parent=46 // loop_exit
            _
        $region47: #{conv_transpose_model_forward.1} parent=31 // pred_fallthru
          _
      $region32: #{conv_transpose_model_forward.1} parent=27 // pred_fallthru
        _
      // Predicated region
      $region33: #{conv_transpose_model_forward.1} parent=27 // pred_check
        %p209 = pneg %p205
      $region34: #{conv_transpose_model_forward.1} parent=27 // pred_check_branch
        %211 = sbr.rel (%p209) target = $region36
      $region35: #{conv_transpose_model_forward.1} parent=27 // pred_region
        %s212 = sshll.u32 1, 20
        %s213 = ssub.s32 %s212, 1
        loop: start=0, step=1, limit=1
        $region37: #{conv_transpose_model_forward.1} parent=35 // loop_pre_header
          _
        $region38: #{conv_transpose_model_forward.1} parent=35 // loop_header
          %s215 = sphi 0, %s219
          %p216 = scmp.ge.s32.totalorder %s215, 1
          %s220 = sphi %s203, %s203
          %s221 = sphi [#allocation2], [#allocation2]
        $region39: #{conv_transpose_model_forward.1} parent=35 // loop_header_branch
          %218 = sbr.rel (%p216) target = $region43
        $region40: #{conv_transpose_model_forward.1} parent=35 // loop_body
          %v222 = vld [vmem:[%s220] sm:%s213]
          %223 = vst [vmem:[%s221] sm:%s213] %v222
        $region41: #{conv_transpose_model_forward.1} parent=35 // loop_footer
          %s219 = sadd.s32 1, %s215
        $region42: #{conv_transpose_model_forward.1} parent=35 // loop_footer_branch
          %214 = sbr.rel target = $region38
        $region43: #{conv_transpose_model_forward.1} parent=35 // loop_exit
          _
      $region36: #{conv_transpose_model_forward.1} parent=27 // pred_fallthru
        _
      // Predicated region
      $region62: #{conv_transpose_model_forward.1} parent=27 // pred_check
        _
      $region63: #{conv_transpose_model_forward.1} parent=27 // pred_check_branch
        %260 = sbr.rel (0) target = $region65
      $region64: #{conv_transpose_model_forward.1} parent=27 // pred_region
        %261 = vsyncadd [#allocation3], 320
      $region65: #{conv_transpose_model_forward.1} parent=27 // pred_fallthru
        _
      %s262 = smul.u32 20, 1
      %s263 = sshll.u32 %s262, 4
      %264 = dma.done [#allocation3], %s263
      %v265 = vld [vmem:[#allocation2 + $0x4] sm:$0xff]
      %v266 = vld [vmem:[#allocation2 + $0xc] sm:$0xff]
      %v267 = vld [vmem:[%s1] sm:$0xff]
      %v268 = vld [vmem:[%s1 + $0x8] sm:$0xff]
      %v269 = vld [vmem:[%s1 + $0x10] sm:$0xff]
      %v270 = vld [vmem:[%s1 + $0x18] sm:$0xff]
      %v271 = vld [vmem:[%s1 + $0x20] sm:$0xff]
      %v272 = vld [vmem:[%s1 + $0x28] sm:$0xff]
      %v273 = vld [vmem:[%s1 + $0x30] sm:$0xff]
      %v274 = vld [vmem:[%s1 + $0x38] sm:$0xff]
      %v275 = vld [vmem:[%s1 + $0x40] sm:$0xff]
      %v276 = vld [vmem:[%s1 + $0x48] sm:$0xff]
      %v277 = vld [vmem:[%s1 + $0x50] sm:$0xff]
      %v278 = vld [vmem:[%s1 + $0x58] sm:$0xff]
      %v279 = vld [vmem:[%s1 + $0x60] sm:$0xff]
      %v280 = vld [vmem:[%s1 + $0x68] sm:$0xff]
      %v281 = vld [vmem:[%s1 + $0x70] sm:$0xff]
      %v282 = vld [vmem:[%s1 + $0x78] sm:$0xff]
      %v283 = vld [vmem:[%s1 + $0x80] sm:$0xff]
      %v284 = vld [vmem:[%s1 + $0x88] sm:$0xff]
      %v285 = vld [vmem:[%s1 + $0x90] sm:$0xff]
      %v286 = vld [vmem:[%s1 + $0x98] sm:$0xff]
      %v287 = vld [vmem:[%s1 + $0xa0] sm:$0xff]
      %v288 = vld [vmem:[%s1 + $0xa8] sm:$0xff]
      %v289 = vld [vmem:[%s1 + $0xb0] sm:$0xff]
      %v290 = vld [vmem:[%s1 + $0xb8] sm:$0xff]
      %v291 = vld [vmem:[%s1 + $0xc0] sm:$0xff]
      %v292 = vld [vmem:[%s1 + $0xc8] sm:$0xff]
      %v293 = vld [vmem:[%s1 + $0xd0] sm:$0xff]
      %v294 = vld [vmem:[%s1 + $0xd8] sm:$0xff]
      %v295 = vld [vmem:[%s1 + $0xe0] sm:$0xff]
      %v296 = vld [vmem:[%s1 + $0xe8] sm:$0xff]
      %v297 = vld [vmem:[%s1 + $0xf0] sm:$0xff]
      %v298 = vld [vmem:[%s1 + $0xf8] sm:$0xff]
      %v299 = vld [vmem:[#allocation2 + $0x3] sm:$0xff]
      %v300 = vld [vmem:[#allocation2 + $0xb] sm:$0xff]
      %s301 = scalar_lea.vmem %s1, 256
      %v302 = vld [vmem:[%s301] sm:$0xff]
      %v303 = vld [vmem:[%s301 + $0x8] sm:$0xff]
      %v304 = vld [vmem:[%s301 + $0x10] sm:$0xff]
      %v305 = vld [vmem:[%s301 + $0x18] sm:$0xff]
      %v306 = vld [vmem:[%s301 + $0x20] sm:$0xff]
      %v307 = vld [vmem:[%s301 + $0x28] sm:$0xff]
      %v308 = vld [vmem:[%s301 + $0x30] sm:$0xff]
      %v309 = vld [vmem:[%s301 + $0x38] sm:$0xff]
      %v310 = vld [vmem:[%s301 + $0x40] sm:$0xff]
      %v311 = vld [vmem:[%s301 + $0x48] sm:$0xff]
      %v312 = vld [vmem:[%s301 + $0x50] sm:$0xff]
      %v313 = vld [vmem:[%s301 + $0x58] sm:$0xff]
      %v314 = vld [vmem:[%s301 + $0x60] sm:$0xff]
      %v315 = vld [vmem:[%s301 + $0x68] sm:$0xff]
      %v316 = vld [vmem:[%s301 + $0x70] sm:$0xff]
      %v317 = vld [vmem:[%s301 + $0x78] sm:$0xff]
      %v318 = vld [vmem:[%s301 + $0x80] sm:$0xff]
      %v319 = vld [vmem:[%s301 + $0x88] sm:$0xff]
      %v320 = vld [vmem:[%s301 + $0x90] sm:$0xff]
      %v321 = vld [vmem:[%s301 + $0x98] sm:$0xff]
      %v322 = vld [vmem:[%s301 + $0xa0] sm:$0xff]
      %v323 = vld [vmem:[%s301 + $0xa8] sm:$0xff]
      %v324 = vld [vmem:[%s301 + $0xb0] sm:$0xff]
      %v325 = vld [vmem:[%s301 + $0xb8] sm:$0xff]
      %v326 = vld [vmem:[%s301 + $0xc0] sm:$0xff]
      %v327 = vld [vmem:[%s301 + $0xc8] sm:$0xff]
      %v328 = vld [vmem:[%s301 + $0xd0] sm:$0xff]
      %v329 = vld [vmem:[%s301 + $0xd8] sm:$0xff]
      %v330 = vld [vmem:[%s301 + $0xe0] sm:$0xff]
      %v331 = vld [vmem:[%s301 + $0xe8] sm:$0xff]
      %v332 = vld [vmem:[%s301 + $0xf0] sm:$0xff]
      %v333 = vld [vmem:[%s301 + $0xf8] sm:$0xff]
      %334 = vmatprep.subr.mxu0 %v333
      %335 = vmatpush1.msra.mxu0 %v332
      %336 = vmatprep.subr.mxu0 %v331
      %337 = vmatpush1.msra.mxu0 %v330
      %338 = vmatprep.subr.mxu0 %v329
      %339 = vmatpush1.msra.mxu0 %v328
      %340 = vmatprep.subr.mxu0 %v327
      %341 = vmatpush1.msra.mxu0 %v326
      %342 = vmatprep.subr.mxu0 %v325
      %343 = vmatpush1.msra.mxu0 %v324
      %344 = vmatprep.subr.mxu0 %v323
      %345 = vmatpush1.msra.mxu0 %v322
      %346 = vmatprep.subr.mxu0 %v321
      %347 = vmatpush1.msra.mxu0 %v320
      %348 = vmatprep.subr.mxu0 %v319
      %349 = vmatpush1.msra.mxu0 %v318
      %350 = vmatprep.subr.mxu0 %v317
      %351 = vmatpush1.msra.mxu0 %v316
      %352 = vmatprep.subr.mxu0 %v315
      %353 = vmatpush1.msra.mxu0 %v314
      %354 = vmatprep.subr.mxu0 %v313
      %355 = vmatpush1.msra.mxu0 %v312
      %356 = vmatprep.subr.mxu0 %v311
      %357 = vmatpush1.msra.mxu0 %v310
      %358 = vmatprep.subr.mxu0 %v309
      %359 = vmatpush1.msra.mxu0 %v308
      %360 = vmatprep.subr.mxu0 %v307
      %361 = vmatpush1.msra.mxu0 %v306
      %362 = vmatprep.subr.mxu0 %v305
      %363 = vmatpush1.msra.mxu0 %v304
      %364 = vmatprep.subr.mxu0 %v303
      %365 = vmatpush1.msra.mxu0 %v302
      %366 = vmatprep.subr.mxu0 0.0
      %367 = vmatpush2.msra.mxu0 0.0
      %368 = vmatprep.subr.mxu0 0.0
      %369 = vmatpush2.msra.mxu0 0.0
      %370 = vmatprep.subr.mxu0 0.0
      %371 = vmatpush2.msra.mxu0 0.0
      %372 = vmatprep.subr.mxu0 0.0
      %373 = vmatpush2.msra.mxu0 0.0
      %374 = vmatprep.subr.mxu0 0.0
      %375 = vmatpush2.msra.mxu0 0.0
      %376 = vmatprep.subr.mxu0 0.0
      %377 = vmatpush2.msra.mxu0 0.0
      %378 = vmatprep.subr.mxu0 0.0
      %379 = vmatpush2.msra.mxu0 0.0
      %380 = vmatprep.subr.mxu0 0.0
      %381 = vmatpush2.msra.mxu0 0.0
      %382 = vmatprep.subr.mxu0 0.0
      %383 = vmatpush2.msra.mxu0 0.0
      %384 = vmatprep.subr.mxu0 0.0
      %385 = vmatpush2.msra.mxu0 0.0
      %386 = vmatprep.subr.mxu0 0.0
      %387 = vmatpush2.msra.mxu0 0.0
      %388 = vmatprep.subr.mxu0 0.0
      %389 = vmatpush2.msra.mxu0 0.0
      %390 = vmatprep.subr.mxu0 0.0
      %391 = vmatpush2.msra.mxu0 0.0
      %392 = vmatprep.subr.mxu0 0.0
      %393 = vmatpush2.msra.mxu0 0.0
      %394 = vmatprep.subr.mxu0 0.0
      %395 = vmatpush2.msra.mxu0 0.0
      %396 = vmatprep.subr.mxu0 0.0
      %397 = vmatpush2.msra.mxu0 0.0
      %398 = vmatprep.mubr.f32.mxu0 0.0
      %399 = vmatmul.mubr.f32.gmra.mxu0 %v299
      %v400 = vpop.f32.mrf.mxu0
      %v401 = vadd.f32 0.0, %v400
      %v402 = vpop.f32.mrf.mxu0
      %v403 = vadd.f32 0.0, %v402
      %404 = vmatprep.mubr.f32.mxu0 0.0
      %405 = vmatmul.mubr.f32.gmra.mxu0 %v300
      %v406 = vpop.f32.mrf.mxu0
      %v407 = vadd.f32 0.0, %v406
      %v408 = vpop.f32.mrf.mxu0
      %v409 = vadd.f32 0.0, %v408
      %410 = vdwg.mxu0
      %411 = vmatprep.subr.mxu0 %v298
      %412 = vmatpush1.msra.mxu0 %v297
      %413 = vmatprep.subr.mxu0 %v296
      %414 = vmatpush1.msra.mxu0 %v295
      %415 = vmatprep.subr.mxu0 %v294
      %416 = vmatpush1.msra.mxu0 %v293
      %417 = vmatprep.subr.mxu0 %v292
      %418 = vmatpush1.msra.mxu0 %v291
      %419 = vmatprep.subr.mxu0 %v290
      %420 = vmatpush1.msra.mxu0 %v289
      %421 = vmatprep.subr.mxu0 %v288
      %422 = vmatpush1.msra.mxu0 %v287
      %423 = vmatprep.subr.mxu0 %v286
      %424 = vmatpush1.msra.mxu0 %v285
      %425 = vmatprep.subr.mxu0 %v284
      %426 = vmatpush1.msra.mxu0 %v283
      %427 = vmatprep.subr.mxu0 %v282
      %428 = vmatpush1.msra.mxu0 %v281
      %429 = vmatprep.subr.mxu0 %v280
      %430 = vmatpush1.msra.mxu0 %v279
      %431 = vmatprep.subr.mxu0 %v278
      %432 = vmatpush1.msra.mxu0 %v277
      %433 = vmatprep.subr.mxu0 %v276
      %434 = vmatpush1.msra.mxu0 %v275
      %435 = vmatprep.subr.mxu0 %v274
      %436 = vmatpush1.msra.mxu0 %v273
      %437 = vmatprep.subr.mxu0 %v272
      %438 = vmatpush1.msra.mxu0 %v271
      %439 = vmatprep.subr.mxu0 %v270
      %440 = vmatpush1.msra.mxu0 %v269
      %441 = vmatprep.subr.mxu0 %v268
      %442 = vmatpush1.msra.mxu0 %v267
      %443 = vmatprep.subr.mxu0 0.0
      %444 = vmatpush2.msra.mxu0 0.0
      %445 = vmatprep.subr.mxu0 0.0
      %446 = vmatpush2.msra.mxu0 0.0
      %447 = vmatprep.subr.mxu0 0.0
      %448 = vmatpush2.msra.mxu0 0.0
      %449 = vmatprep.subr.mxu0 0.0
      %450 = vmatpush2.msra.mxu0 0.0
      %451 = vmatprep.subr.mxu0 0.0
      %452 = vmatpush2.msra.mxu0 0.0
      %453 = vmatprep.subr.mxu0 0.0
      %454 = vmatpush2.msra.mxu0 0.0
      %455 = vmatprep.subr.mxu0 0.0
      %456 = vmatpush2.msra.mxu0 0.0
      %457 = vmatprep.subr.mxu0 0.0
      %458 = vmatpush2.msra.mxu0 0.0
      %459 = vmatprep.subr.mxu0 0.0
      %460 = vmatpush2.msra.mxu0 0.0
      %461 = vmatprep.subr.mxu0 0.0
      %462 = vmatpush2.msra.mxu0 0.0
      %463 = vmatprep.subr.mxu0 0.0
      %464 = vmatpush2.msra.mxu0 0.0
      %465 = vmatprep.subr.mxu0 0.0
      %466 = vmatpush2.msra.mxu0 0.0
      %467 = vmatprep.subr.mxu0 0.0
      %468 = vmatpush2.msra.mxu0 0.0
      %469 = vmatprep.subr.mxu0 0.0
      %470 = vmatpush2.msra.mxu0 0.0
      %471 = vmatprep.subr.mxu0 0.0
      %472 = vmatpush2.msra.mxu0 0.0
      %473 = vmatprep.subr.mxu0 0.0
      %474 = vmatpush2.msra.mxu0 0.0
      %475 = vmatprep.mubr.f32.mxu0 0.0
      %476 = vmatmul.mubr.f32.gmra.mxu0 %v265
      %v477 = vpop.f32.mrf.mxu0
      %v478 = vadd.f32 %v401, %v477
      %v479 = vpop.f32.mrf.mxu0
      %v480 = vadd.f32 %v403, %v479
      %481 = vmatprep.mubr.f32.mxu0 0.0
      %482 = vmatmul.mubr.f32.gmra.mxu0 %v266
      %v483 = vpop.f32.mrf.mxu0
      %v484 = vadd.f32 %v407, %v483
      %v485 = vpop.f32.mrf.mxu0
      %v486 = vadd.f32 %v409, %v485
      %487 = vdwg.mxu0
      %v488 = vld [vmem:[#allocation2 + $0x2] sm:$0xff]
      %v489 = vld [vmem:[#allocation2 + $0xa] sm:$0xff]
      %s490 = scalar_lea.vmem %s1, 512
      %v491 = vld [vmem:[%s490] sm:$0xff]
      %v492 = vld [vmem:[%s490 + $0x8] sm:$0xff]
      %v493 = vld [vmem:[%s490 + $0x10] sm:$0xff]
      %v494 = vld [vmem:[%s490 + $0x18] sm:$0xff]
      %v495 = vld [vmem:[%s490 + $0x20] sm:$0xff]
      %v496 = vld [vmem:[%s490 + $0x28] sm:$0xff]
      %v497 = vld [vmem:[%s490 + $0x30] sm:$0xff]
      %v498 = vld [vmem:[%s490 + $0x38] sm:$0xff]
      %v499 = vld [vmem:[%s490 + $0x40] sm:$0xff]
      %v500 = vld [vmem:[%s490 + $0x48] sm:$0xff]
      %v501 = vld [vmem:[%s490 + $0x50] sm:$0xff]
      %v502 = vld [vmem:[%s490 + $0x58] sm:$0xff]
      %v503 = vld [vmem:[%s490 + $0x60] sm:$0xff]
      %v504 = vld [vmem:[%s490 + $0x68] sm:$0xff]
      %v505 = vld [vmem:[%s490 + $0x70] sm:$0xff]
      %v506 = vld [vmem:[%s490 + $0x78] sm:$0xff]
      %v507 = vld [vmem:[%s490 + $0x80] sm:$0xff]
      %v508 = vld [vmem:[%s490 + $0x88] sm:$0xff]
      %v509 = vld [vmem:[%s490 + $0x90] sm:$0xff]
      %v510 = vld [vmem:[%s490 + $0x98] sm:$0xff]
      %v511 = vld [vmem:[%s490 + $0xa0] sm:$0xff]
      %v512 = vld [vmem:[%s490 + $0xa8] sm:$0xff]
      %v513 = vld [vmem:[%s490 + $0xb0] sm:$0xff]
      %v514 = vld [vmem:[%s490 + $0xb8] sm:$0xff]
      %v515 = vld [vmem:[%s490 + $0xc0] sm:$0xff]
      %v516 = vld [vmem:[%s490 + $0xc8] sm:$0xff]
      %v517 = vld [vmem:[%s490 + $0xd0] sm:$0xff]
      %v518 = vld [vmem:[%s490 + $0xd8] sm:$0xff]
      %v519 = vld [vmem:[%s490 + $0xe0] sm:$0xff]
      %v520 = vld [vmem:[%s490 + $0xe8] sm:$0xff]
      %v521 = vld [vmem:[%s490 + $0xf0] sm:$0xff]
      %v522 = vld [vmem:[%s490 + $0xf8] sm:$0xff]
      %523 = vmatprep.subr.mxu0 %v522
      %524 = vmatpush1.msra.mxu0 %v521
      %525 = vmatprep.subr.mxu0 %v520
      %526 = vmatpush1.msra.mxu0 %v519
      %527 = vmatprep.subr.mxu0 %v518
      %528 = vmatpush1.msra.mxu0 %v517
      %529 = vmatprep.subr.mxu0 %v516
      %530 = vmatpush1.msra.mxu0 %v515
      %531 = vmatprep.subr.mxu0 %v514
      %532 = vmatpush1.msra.mxu0 %v513
      %533 = vmatprep.subr.mxu0 %v512
      %534 = vmatpush1.msra.mxu0 %v511
      %535 = vmatprep.subr.mxu0 %v510
      %536 = vmatpush1.msra.mxu0 %v509
      %537 = vmatprep.subr.mxu0 %v508
      %538 = vmatpush1.msra.mxu0 %v507
      %539 = vmatprep.subr.mxu0 %v506
      %540 = vmatpush1.msra.mxu0 %v505
      %541 = vmatprep.subr.mxu0 %v504
      %542 = vmatpush1.msra.mxu0 %v503
      %543 = vmatprep.subr.mxu0 %v502
      %544 = vmatpush1.msra.mxu0 %v501
      %545 = vmatprep.subr.mxu0 %v500
      %546 = vmatpush1.msra.mxu0 %v499
      %547 = vmatprep.subr.mxu0 %v498
      %548 = vmatpush1.msra.mxu0 %v497
      %549 = vmatprep.subr.mxu0 %v496
      %550 = vmatpush1.msra.mxu0 %v495
      %551 = vmatprep.subr.mxu0 %v494
      %552 = vmatpush1.msra.mxu0 %v493
      %553 = vmatprep.subr.mxu0 %v492
      %554 = vmatpush1.msra.mxu0 %v491
      %555 = vmatprep.subr.mxu0 0.0
      %556 = vmatpush2.msra.mxu0 0.0
      %557 = vmatprep.subr.mxu0 0.0
      %558 = vmatpush2.msra.mxu0 0.0
      %559 = vmatprep.subr.mxu0 0.0
      %560 = vmatpush2.msra.mxu0 0.0
      %561 = vmatprep.subr.mxu0 0.0
      %562 = vmatpush2.msra.mxu0 0.0
      %563 = vmatprep.subr.mxu0 0.0
      %564 = vmatpush2.msra.mxu0 0.0
      %565 = vmatprep.subr.mxu0 0.0
      %566 = vmatpush2.msra.mxu0 0.0
      %567 = vmatprep.subr.mxu0 0.0
      %568 = vmatpush2.msra.mxu0 0.0
      %569 = vmatprep.subr.mxu0 0.0
      %570 = vmatpush2.msra.mxu0 0.0
      %571 = vmatprep.subr.mxu0 0.0
      %572 = vmatpush2.msra.mxu0 0.0
      %573 = vmatprep.subr.mxu0 0.0
      %574 = vmatpush2.msra.mxu0 0.0
      %575 = vmatprep.subr.mxu0 0.0
      %576 = vmatpush2.msra.mxu0 0.0
      %577 = vmatprep.subr.mxu0 0.0
      %578 = vmatpush2.msra.mxu0 0.0
      %579 = vmatprep.subr.mxu0 0.0
      %580 = vmatpush2.msra.mxu0 0.0
      %581 = vmatprep.subr.mxu0 0.0
      %582 = vmatpush2.msra.mxu0 0.0
      %583 = vmatprep.subr.mxu0 0.0
      %584 = vmatpush2.msra.mxu0 0.0
      %585 = vmatprep.subr.mxu0 0.0
      %586 = vmatpush2.msra.mxu0 0.0
      %587 = vmatprep.mubr.f32.mxu0 0.0
      %588 = vmatmul.mubr.f32.gmra.mxu0 %v488
      %v589 = vpop.f32.mrf.mxu0
      %v590 = vadd.f32 0.0, %v589
      %v591 = vpop.f32.mrf.mxu0
      %v592 = vadd.f32 0.0, %v591
      %593 = vmatprep.mubr.f32.mxu0 0.0
      %594 = vmatmul.mubr.f32.gmra.mxu0 %v489
      %v595 = vpop.f32.mrf.mxu0
      %v596 = vadd.f32 0.0, %v595
      %v597 = vpop.f32.mrf.mxu0
      %v598 = vadd.f32 0.0, %v597
      %599 = vdwg.mxu0
      %v600 = vadd.f32 %v478, %v590
      %v601 = vadd.f32 %v480, %v592
      %v602 = vadd.f32 %v484, %v596
      %v603 = vadd.f32 %v486, %v598
      %v604 = vld [vmem:[#allocation2 + $0x1] sm:$0xff]
      %v605 = vld [vmem:[#allocation2 + $0x9] sm:$0xff]
      %s606 = scalar_lea.vmem %s1, 768
      %v607 = vld [vmem:[%s606] sm:$0xff]
      %v608 = vld [vmem:[%s606 + $0x8] sm:$0xff]
      %v609 = vld [vmem:[%s606 + $0x10] sm:$0xff]
      %v610 = vld [vmem:[%s606 + $0x18] sm:$0xff]
      %v611 = vld [vmem:[%s606 + $0x20] sm:$0xff]
      %v612 = vld [vmem:[%s606 + $0x28] sm:$0xff]
      %v613 = vld [vmem:[%s606 + $0x30] sm:$0xff]
      %v614 = vld [vmem:[%s606 + $0x38] sm:$0xff]
      %v615 = vld [vmem:[%s606 + $0x40] sm:$0xff]
      %v616 = vld [vmem:[%s606 + $0x48] sm:$0xff]
      %v617 = vld [vmem:[%s606 + $0x50] sm:$0xff]
      %v618 = vld [vmem:[%s606 + $0x58] sm:$0xff]
      %v619 = vld [vmem:[%s606 + $0x60] sm:$0xff]
      %v620 = vld [vmem:[%s606 + $0x68] sm:$0xff]
      %v621 = vld [vmem:[%s606 + $0x70] sm:$0xff]
      %v622 = vld [vmem:[%s606 + $0x78] sm:$0xff]
      %v623 = vld [vmem:[%s606 + $0x80] sm:$0xff]
      %v624 = vld [vmem:[%s606 + $0x88] sm:$0xff]
      %v625 = vld [vmem:[%s606 + $0x90] sm:$0xff]
      %v626 = vld [vmem:[%s606 + $0x98] sm:$0xff]
      %v627 = vld [vmem:[%s606 + $0xa0] sm:$0xff]
      %v628 = vld [vmem:[%s606 + $0xa8] sm:$0xff]
      %v629 = vld [vmem:[%s606 + $0xb0] sm:$0xff]
      %v630 = vld [vmem:[%s606 + $0xb8] sm:$0xff]
      %v631 = vld [vmem:[%s606 + $0xc0] sm:$0xff]
      %v632 = vld [vmem:[%s606 + $0xc8] sm:$0xff]
      %v633 = vld [vmem:[%s606 + $0xd0] sm:$0xff]
      %v634 = vld [vmem:[%s606 + $0xd8] sm:$0xff]
      %v635 = vld [vmem:[%s606 + $0xe0] sm:$0xff]
      %v636 = vld [vmem:[%s606 + $0xe8] sm:$0xff]
      %v637 = vld [vmem:[%s606 + $0xf0] sm:$0xff]
      %v638 = vld [vmem:[%s606 + $0xf8] sm:$0xff]
      %639 = vmatprep.subr.mxu0 %v638
      %640 = vmatpush1.msra.mxu0 %v637
      %641 = vmatprep.subr.mxu0 %v636
      %642 = vmatpush1.msra.mxu0 %v635
      %643 = vmatprep.subr.mxu0 %v634
      %644 = vmatpush1.msra.mxu0 %v633
      %645 = vmatprep.subr.mxu0 %v632
      %646 = vmatpush1.msra.mxu0 %v631
      %647 = vmatprep.subr.mxu0 %v630
      %648 = vmatpush1.msra.mxu0 %v629
      %649 = vmatprep.subr.mxu0 %v628
      %650 = vmatpush1.msra.mxu0 %v627
      %651 = vmatprep.subr.mxu0 %v626
      %652 = vmatpush1.msra.mxu0 %v625
      %653 = vmatprep.subr.mxu0 %v624
      %654 = vmatpush1.msra.mxu0 %v623
      %655 = vmatprep.subr.mxu0 %v622
      %656 = vmatpush1.msra.mxu0 %v621
      %657 = vmatprep.subr.mxu0 %v620
      %658 = vmatpush1.msra.mxu0 %v619
      %659 = vmatprep.subr.mxu0 %v618
      %660 = vmatpush1.msra.mxu0 %v617
      %661 = vmatprep.subr.mxu0 %v616
      %662 = vmatpush1.msra.mxu0 %v615
      %663 = vmatprep.subr.mxu0 %v614
      %664 = vmatpush1.msra.mxu0 %v613
      %665 = vmatprep.subr.mxu0 %v612
      %666 = vmatpush1.msra.mxu0 %v611
      %667 = vmatprep.subr.mxu0 %v610
      %668 = vmatpush1.msra.mxu0 %v609
      %669 = vmatprep.subr.mxu0 %v608
      %670 = vmatpush1.msra.mxu0 %v607
      %671 = vmatprep.subr.mxu0 0.0
      %672 = vmatpush2.msra.mxu0 0.0
      %673 = vmatprep.subr.mxu0 0.0
      %674 = vmatpush2.msra.mxu0 0.0
      %675 = vmatprep.subr.mxu0 0.0
      %676 = vmatpush2.msra.mxu0 0.0
      %677 = vmatprep.subr.mxu0 0.0
      %678 = vmatpush2.msra.mxu0 0.0
      %679 = vmatprep.subr.mxu0 0.0
      %680 = vmatpush2.msra.mxu0 0.0
      %681 = vmatprep.subr.mxu0 0.0
      %682 = vmatpush2.msra.mxu0 0.0
      %683 = vmatprep.subr.mxu0 0.0
      %684 = vmatpush2.msra.mxu0 0.0
      %685 = vmatprep.subr.mxu0 0.0
      %686 = vmatpush2.msra.mxu0 0.0
      %687 = vmatprep.subr.mxu0 0.0
      %688 = vmatpush2.msra.mxu0 0.0
      %689 = vmatprep.subr.mxu0 0.0
      %690 = vmatpush2.msra.mxu0 0.0
      %691 = vmatprep.subr.mxu0 0.0
      %692 = vmatpush2.msra.mxu0 0.0
      %693 = vmatprep.subr.mxu0 0.0
      %694 = vmatpush2.msra.mxu0 0.0
      %695 = vmatprep.subr.mxu0 0.0
      %696 = vmatpush2.msra.mxu0 0.0
      %697 = vmatprep.subr.mxu0 0.0
      %698 = vmatpush2.msra.mxu0 0.0
      %699 = vmatprep.subr.mxu0 0.0
      %700 = vmatpush2.msra.mxu0 0.0
      %701 = vmatprep.subr.mxu0 0.0
      %702 = vmatpush2.msra.mxu0 0.0
      %703 = vmatprep.mubr.f32.mxu0 0.0
      %704 = vmatmul.mubr.f32.gmra.mxu0 %v604
      %v705 = vpop.f32.mrf.mxu0
      %v706 = vadd.f32 0.0, %v705
      %v707 = vpop.f32.mrf.mxu0
      %v708 = vadd.f32 0.0, %v707
      %709 = vmatprep.mubr.f32.mxu0 0.0
      %710 = vmatmul.mubr.f32.gmra.mxu0 %v605
      %v711 = vpop.f32.mrf.mxu0
      %v712 = vadd.f32 0.0, %v711
      %v713 = vpop.f32.mrf.mxu0
      %v714 = vadd.f32 0.0, %v713
      %715 = vdwg.mxu0
      %v716 = vadd.f32 %v600, %v706
      %v717 = vadd.f32 %v601, %v708
      %v718 = vadd.f32 %v602, %v712
      %v719 = vadd.f32 %v603, %v714
      %v720 = vld [vmem:[#allocation2] sm:$0xff]
      %v721 = vld [vmem:[#allocation2 + $0x8] sm:$0xff]
      %s722 = scalar_lea.vmem %s1, 1024
      %v723 = vld [vmem:[%s722] sm:$0xff]
      %v724 = vld [vmem:[%s722 + $0x8] sm:$0xff]
      %v725 = vld [vmem:[%s722 + $0x10] sm:$0xff]
      %v726 = vld [vmem:[%s722 + $0x18] sm:$0xff]
      %v727 = vld [vmem:[%s722 + $0x20] sm:$0xff]
      %v728 = vld [vmem:[%s722 + $0x28] sm:$0xff]
      %v729 = vld [vmem:[%s722 + $0x30] sm:$0xff]
      %v730 = vld [vmem:[%s722 + $0x38] sm:$0xff]
      %v731 = vld [vmem:[%s722 + $0x40] sm:$0xff]
      %v732 = vld [vmem:[%s722 + $0x48] sm:$0xff]
      %v733 = vld [vmem:[%s722 + $0x50] sm:$0xff]
      %v734 = vld [vmem:[%s722 + $0x58] sm:$0xff]
      %v735 = vld [vmem:[%s722 + $0x60] sm:$0xff]
      %v736 = vld [vmem:[%s722 + $0x68] sm:$0xff]
      %v737 = vld [vmem:[%s722 + $0x70] sm:$0xff]
      %v738 = vld [vmem:[%s722 + $0x78] sm:$0xff]
      %v739 = vld [vmem:[%s722 + $0x80] sm:$0xff]
      %v740 = vld [vmem:[%s722 + $0x88] sm:$0xff]
      %v741 = vld [vmem:[%s722 + $0x90] sm:$0xff]
      %v742 = vld [vmem:[%s722 + $0x98] sm:$0xff]
      %v743 = vld [vmem:[%s722 + $0xa0] sm:$0xff]
      %v744 = vld [vmem:[%s722 + $0xa8] sm:$0xff]
      %v745 = vld [vmem:[%s722 + $0xb0] sm:$0xff]
      %v746 = vld [vmem:[%s722 + $0xb8] sm:$0xff]
      %v747 = vld [vmem:[%s722 + $0xc0] sm:$0xff]
      %v748 = vld [vmem:[%s722 + $0xc8] sm:$0xff]
      %v749 = vld [vmem:[%s722 + $0xd0] sm:$0xff]
      %v750 = vld [vmem:[%s722 + $0xd8] sm:$0xff]
      %v751 = vld [vmem:[%s722 + $0xe0] sm:$0xff]
      %v752 = vld [vmem:[%s722 + $0xe8] sm:$0xff]
      %v753 = vld [vmem:[%s722 + $0xf0] sm:$0xff]
      %v754 = vld [vmem:[%s722 + $0xf8] sm:$0xff]
      %755 = vmatprep.subr.mxu0 %v754
      %756 = vmatpush1.msra.mxu0 %v753
      %757 = vmatprep.subr.mxu0 %v752
      %758 = vmatpush1.msra.mxu0 %v751
      %759 = vmatprep.subr.mxu0 %v750
      %760 = vmatpush1.msra.mxu0 %v749
      %761 = vmatprep.subr.mxu0 %v748
      %762 = vmatpush1.msra.mxu0 %v747
      %763 = vmatprep.subr.mxu0 %v746
      %764 = vmatpush1.msra.mxu0 %v745
      %765 = vmatprep.subr.mxu0 %v744
      %766 = vmatpush1.msra.mxu0 %v743
      %767 = vmatprep.subr.mxu0 %v742
      %768 = vmatpush1.msra.mxu0 %v741
      %769 = vmatprep.subr.mxu0 %v740
      %770 = vmatpush1.msra.mxu0 %v739
      %771 = vmatprep.subr.mxu0 %v738
      %772 = vmatpush1.msra.mxu0 %v737
      %773 = vmatprep.subr.mxu0 %v736
      %774 = vmatpush1.msra.mxu0 %v735
      %775 = vmatprep.subr.mxu0 %v734
      %776 = vmatpush1.msra.mxu0 %v733
      %777 = vmatprep.subr.mxu0 %v732
      %778 = vmatpush1.msra.mxu0 %v731
      %779 = vmatprep.subr.mxu0 %v730
      %780 = vmatpush1.msra.mxu0 %v729
      %781 = vmatprep.subr.mxu0 %v728
      %782 = vmatpush1.msra.mxu0 %v727
      %783 = vmatprep.subr.mxu0 %v726
      %784 = vmatpush1.msra.mxu0 %v725
      %785 = vmatprep.subr.mxu0 %v724
      %786 = vmatpush1.msra.mxu0 %v723
      %787 = vmatprep.subr.mxu0 0.0
      %788 = vmatpush2.msra.mxu0 0.0
      %789 = vmatprep.subr.mxu0 0.0
      %790 = vmatpush2.msra.mxu0 0.0
      %791 = vmatprep.subr.mxu0 0.0
      %792 = vmatpush2.msra.mxu0 0.0
      %793 = vmatprep.subr.mxu0 0.0
      %794 = vmatpush2.msra.mxu0 0.0
      %795 = vmatprep.subr.mxu0 0.0
      %796 = vmatpush2.msra.mxu0 0.0
      %797 = vmatprep.subr.mxu0 0.0
      %798 = vmatpush2.msra.mxu0 0.0
      %799 = vmatprep.subr.mxu0 0.0
      %800 = vmatpush2.msra.mxu0 0.0
      %801 = vmatprep.subr.mxu0 0.0
      %802 = vmatpush2.msra.mxu0 0.0
      %803 = vmatprep.subr.mxu0 0.0
      %804 = vmatpush2.msra.mxu0 0.0
      %805 = vmatprep.subr.mxu0 0.0
      %806 = vmatpush2.msra.mxu0 0.0
      %807 = vmatprep.subr.mxu0 0.0
      %808 = vmatpush2.msra.mxu0 0.0
      %809 = vmatprep.subr.mxu0 0.0
      %810 = vmatpush2.msra.mxu0 0.0
      %811 = vmatprep.subr.mxu0 0.0
      %812 = vmatpush2.msra.mxu0 0.0
      %813 = vmatprep.subr.mxu0 0.0
      %814 = vmatpush2.msra.mxu0 0.0
      %815 = vmatprep.subr.mxu0 0.0
      %816 = vmatpush2.msra.mxu0 0.0
      %817 = vmatprep.subr.mxu0 0.0
      %818 = vmatpush2.msra.mxu0 0.0
      %819 = vmatprep.mubr.f32.mxu0 0.0
      %820 = vmatmul.mubr.f32.gmra.mxu0 %v720
      %v821 = vpop.f32.mrf.mxu0
      %v822 = vadd.f32 0.0, %v821
      %v823 = vpop.f32.mrf.mxu0
      %v824 = vadd.f32 0.0, %v823
      %825 = vmatprep.mubr.f32.mxu0 0.0
      %826 = vmatmul.mubr.f32.gmra.mxu0 %v721
      %v827 = vpop.f32.mrf.mxu0
      %v828 = vadd.f32 0.0, %v827
      %v829 = vpop.f32.mrf.mxu0
      %v830 = vadd.f32 0.0, %v829
      %831 = vdwg.mxu0
      %v832 = vadd.f32 %v716, %v822
      %v833 = vadd.f32 %v717, %v824
      %v834 = vadd.f32 %v718, %v828
      %v835 = vadd.f32 %v719, %v830
      %v836 = vld [vmem:[%s2] sm:$0x3]
      %v838 = vlaneseq
      %v839 = vshrl.u32 %v838, 7
      %v840 = vsub.s32 0, %v839
      %v841 = vrot.slane %v836, %v840
      %v842 = vlaneseq
      %v843 = vshrl.u32 %v842, 7
      %v844 = vsub.s32 1, %v843
      %v845 = vrot.slane %v836, %v844
      %v848 = vadd.f32 %v832, %v841
      %v849 = vadd.f32 %v833, %v845
      %v850 = vadd.f32 %v834, %v841
      %v851 = vadd.f32 %v835, %v845
      %v852 = vmul.f32 %v848, 0.5
      %v853 = vmul.f32 %v849, 0.5
      %v854 = vmul.f32 %v850, 0.5
      %v855 = vmul.f32 %v851, 0.5
      %v856 = vmul.f32 %v848, 0.70710677
      %v857 = vmul.f32 %v849, 0.70710677
      %v858 = vmul.f32 %v850, 0.70710677
      %v859 = vmul.f32 %v851, 0.70710677
      %v860 = verf.f32.pop %v856
      %v861 = verf.f32.pop %v857
      %v862 = verf.f32.pop %v858
      %v863 = verf.f32.pop %v859
      %v864 = vadd.f32 %v860, 1.0
      %v865 = vadd.f32 %v861, 1.0
      %v866 = vadd.f32 %v862, 1.0
      %v867 = vadd.f32 %v863, 1.0
      %v868 = vmul.f32 %v852, %v864
      %v869 = vmul.f32 %v853, %v865
      %v870 = vmul.f32 %v854, %v866
      %v871 = vmul.f32 %v855, %v867
      %872 = vst [vmem:[%s189] sm:$0xff] %v868
      %873 = vst [vmem:[%s189 + $0x8] sm:$0xff] %v869
      %874 = vst [vmem:[%s189 + $0x10] sm:$0xff] %v870
      %875 = vst [vmem:[%s189 + $0x18] sm:$0xff] %v871
      %v876 = vadd.f32 %v868, %v870
      %v877 = vrot.slane %v876, 4
      %v878 = vadd.f32 %v876, %v877
      %v879 = vrot.slane %v878, 2
      %v880 = vadd.f32 %v878, %v879
      %v881 = vrot.slane %v880, 1
      %v882 = vadd.f32 %v880, %v881
      %v883 = vadd.f32 %v869, %v871
      %v884 = vrot.slane %v883, 4
      %v885 = vadd.f32 %v883, %v884
      %v886 = vrot.slane %v885, 2
      %v887 = vadd.f32 %v885, %v886
      %v888 = vrot.slane %v887, 1
      %v889 = vadd.f32 %v887, %v888
      %v890 = vmul.f32 %v868, %v868
      %v891 = vmul.f32 %v869, %v869
      %v892 = vmul.f32 %v870, %v870
      %v893 = vmul.f32 %v871, %v871
      %v894 = vadd.f32 %v890, %v892
      %v895 = vrot.slane %v894, 4
      %v896 = vadd.f32 %v894, %v895
      %v897 = vrot.slane %v896, 2
      %v898 = vadd.f32 %v896, %v897
      %v899 = vrot.slane %v898, 1
      %v900 = vadd.f32 %v898, %v899
      %v901 = vadd.f32 %v891, %v893
      %v902 = vrot.slane %v901, 4
      %v903 = vadd.f32 %v901, %v902
      %v904 = vrot.slane %v903, 2
      %v905 = vadd.f32 %v903, %v904
      %v906 = vrot.slane %v905, 1
      %v907 = vadd.f32 %v905, %v906
      %vm908 = vcmask 1040384
      %v909 = vsel %vm908, %v882, %v900
      %v910 = vsel %vm908, %v889, %v907
      %vm911 = vcmask 1041408
      %v912 = vsel %vm911, %v909, 0.0
      %v913 = vsel %vm911, %v910, 0.0
      %914 = vst [vmem:[%s199] sm:$0xff] %v912
      %915 = vst [vmem:[%s199 + $0x8] sm:$0xff] %v913
      %s916 = smul.u32 2, %s21
      %p917 = scmp.lt.s32.totalorder %s20, 1
      %s918 = scalar_select %p917, %s20, 1
      %p919 = scmp.lt.s32.totalorder %s916, 1
      %s920 = scalar_select %p919, %s916, 1
      %s921 = smul.addr %s920, 2
      %s922 = smul.addr %s918, 4
      %s923 = sadd.s32 %s921, %s922
      %s924 = smul.addr %s923, 8
      %s925 = scalar_lea.vmem %s3, %s924
      %p926 = scmp.lt.s32.totalorder %s20, 1
      %s927 = scalar_select %p926, %s20, 1
      %p928 = scmp.lt.s32.totalorder %s21, 0
      %s929 = scalar_select %p928, %s21, 0
      %s930 = smul.addr %s929, 2
      %s931 = smul.addr %s927, 2
      %s932 = sadd.s32 %s930, %s931
      %s933 = smul.addr %s932, 8
      %s934 = scalar_lea.vmem %s4, %s933
      // Predicated region
      $region66: #{conv_transpose_model_forward.1} parent=27 // pred_check
        %p935 = pneg %p90
      $region67: #{conv_transpose_model_forward.1} parent=27 // pred_check_branch
        %937 = sbr.rel (%p935) target = $region69
      $region68: #{conv_transpose_model_forward.1} parent=27 // pred_region
        %s938 = smul.u32 2, %s21
      $region69: #{conv_transpose_model_forward.1} parent=27 // pred_fallthru
        _
      // Predicated region
      $region70: #{conv_transpose_model_forward.1} parent=27 // pred_check
        %p939 = pneg %p118
      $region71: #{conv_transpose_model_forward.1} parent=27 // pred_check_branch
        %941 = sbr.rel (%p939) target = $region73
      $region72: #{conv_transpose_model_forward.1} parent=27 // pred_region
        _
      $region73: #{conv_transpose_model_forward.1} parent=27 // pred_fallthru
        _
    $region28: #{conv_transpose_model_forward.1} parent=5 // pred_fallthru
      _
    %p942 = scmp.le.s32.totalorder 2, %s11
    // Predicated region
    $region74: #{conv_transpose_model_forward.1} parent=5 // pred_check
      %p943 = pneg %p942
    $region75: #{conv_transpose_model_forward.1} parent=5 // pred_check_branch
      %945 = sbr.rel (%p943) target = $region77
    $region76: #{conv_transpose_model_forward.1} parent=5 // pred_region
      %s946 = ssub.s32 %s11, 2
      // Predicated region
      $region78: #{conv_transpose_model_forward.1} parent=76 // pred_check
        %p947 = pneg %p96
      $region79: #{conv_transpose_model_forward.1} parent=76 // pred_check_branch
        %949 = sbr.rel (%p947) target = $region81
      $region80: #{conv_transpose_model_forward.1} parent=76 // pred_region
        %s950 = smul.u32 2, %s23
        %p951 = scmp.lt.s32.totalorder %s22, 1
        %s952 = scalar_select %p951, %s22, 1
        %p953 = scmp.lt.s32.totalorder %s950, 1
        %s954 = scalar_select %p953, %s950, 1
        %s955 = smul.addr %s954, 2
        %s956 = smul.addr %s952, 4
        %s957 = sadd.s32 %s955, %s956
        %s958 = smul.addr %s957, 8
        %s959 = scalar_lea.vmem %s3, %s958
      $region81: #{conv_transpose_model_forward.1} parent=76 // pred_fallthru
        _
      // Predicated region
      $region82: #{conv_transpose_model_forward.1} parent=76 // pred_check
        %p960 = pneg %p124
      $region83: #{conv_transpose_model_forward.1} parent=76 // pred_check_branch
        %962 = sbr.rel (%p960) target = $region85
      $region84: #{conv_transpose_model_forward.1} parent=76 // pred_region
        %p963 = scmp.lt.s32.totalorder %s22, 1
        %s964 = scalar_select %p963, %s22, 1
        %p965 = scmp.lt.s32.totalorder %s23, 0
        %s966 = scalar_select %p965, %s23, 0
        %s967 = smul.addr %s966, 2
        %s968 = smul.addr %s964, 2
        %s969 = sadd.s32 %s967, %s968
        %s970 = smul.addr %s969, 8
        %s971 = scalar_lea.vmem %s4, %s970
      $region85: #{conv_transpose_model_forward.1} parent=76 // pred_fallthru
        _
    $region77: #{conv_transpose_model_forward.1} parent=5 // pred_fallthru
      _
  $region6: #{conv_transpose_model_forward.1} parent=0 // loop_footer
    %s15 = sadd.s32 1, %s11
  $region7: #{conv_transpose_model_forward.1} parent=0 // loop_footer_branch
    %10 = sbr.rel target = $region3
  $region8: #{conv_transpose_model_forward.1} parent=0 // loop_exit
    _
  %972 = vsyncmov [#allocation3]
  %s973 = vpop.sfrf %972
  %p974 = scmp.eq.s32.totalorder %s973, 0
  %p975 = pneg %p974
  %977 = shalt.err (%p975)

</llo_original>
